<compile_context>
chip_gen: v7x
topology: tpu7x:2x2x1
jax: 0.10.0
libtpu: 0.0.40
codegen_flags: <defaults>
</compile_context>

<pallas_src>
import jax
import jax.numpy as jnp
from jax.experimental import pallas as pl
from jax.experimental.pallas import tpu as pltpu


# ---------------------------------------------------------------- kernels ---

def _frame_full_kernel(x_ref, o_ref):
    # x_ref / o_ref: (TB, N, N) slab of whole matrices.
    x = x_ref[...]
    xt = jnp.transpose(x, (0, 2, 1))      # real dtype => conj is a no-op
    o_ref[...] = (x - xt) * 0.5


def _frame_panel_kernel(xr_ref, xc_ref, o_ref):
    # xr_ref: (1, TN, N) row panel of X     (rows  i*TN .. i*TN+TN)
    # xc_ref: (1, N, TN) column panel of X  (cols  i*TN .. i*TN+TN)
    a = xr_ref[...]
    b = xc_ref[...]
    o_ref[...] = (a - jnp.transpose(b, (0, 2, 1))) * 0.5


def _frame_tile_kernel(xa_ref, xb_ref, o_ref):
    # xa_ref: (1, TN, TN) tile of X at block (b, i, j)
    # xb_ref: (1, TN, TN) tile of X at block (b, j, i)  -> transposed locally
    a = xa_ref[...]
    b = xb_ref[...]
    o_ref[...] = (a - jnp.transpose(b, (0, 2, 1))) * 0.5


# ------------------------------------------------------------ VMEM sizing ---

_SMALL_BYPASS_BYTES = 1 << 20       # below this, skip Pallas entirely


def _vmem_cap_bytes() -> int:
    """Generation-aware cap on vmem_limit_bytes (leaves compiler headroom)."""
    phys = None
    try:
        info = pltpu.get_tpu_info()
        for name in ("vmem_capacity_bytes", "vmem_bytes", "vmem_size_bytes"):
            v = getattr(info, name, None)
            if isinstance(v, int) and v > 0:
                phys = v
                break
    except Exception:
        phys = None
    if phys is None:
        phys = 64 << 20              # conservative: assume v7x-sized VMEM
    if phys >= (100 << 20):
        return 100 << 20             # v5e / v6e (128 MiB physical)
    return 48 << 20                  # v7x (64 MiB physical per TensorCore)


def _target_block_bytes(cap: int) -> int:
    # One operand block; budget = 3 block-sized buffers (in, transpose temp,
    # out), double-buffered, plus ~8 MiB compiler scratch headroom.
    return int(min(16 << 20, max(2 << 20, (cap - (8 << 20)) // 6)))


def _pick_vmem_limit(live_bytes: int, cap: int) -> int:
    return int(min(max(live_bytes + (8 << 20), 16 << 20), cap))


# --------------------------------------------------------------- wrappers ---

def _frame_full(Xb: jax.Array, N: int, itemsize: int, cap: int) -> jax.Array:
    B = Xb.shape[0]
    per_mat = N * N * itemsize
    target = _target_block_bytes(cap)

    tb = max(1, min(B, target // max(per_mat, 1)))
    nb = pl.cdiv(B, tb)
    if nb < 2 and B >= 2:            # give both v7x TensorCores work
        tb = pl.cdiv(B, 2)
        nb = pl.cdiv(B, tb)
    block_bytes = tb * per_mat       # per operand; ragged last block is masked

    return pl.pallas_call(
        _frame_full_kernel,
        out_shape=jax.ShapeDtypeStruct((B, N, N), Xb.dtype),
        grid_spec=pltpu.PrefetchScalarGridSpec(
            num_scalar_prefetch=0,
            grid=(nb,),
            in_specs=[pl.BlockSpec((tb, N, N), lambda b: (b, 0, 0))],
            out_specs=pl.BlockSpec((tb, N, N), lambda b: (b, 0, 0)),
        ),
        compiler_params=pltpu.CompilerParams(
            dimension_semantics=("parallel",),
            vmem_limit_bytes=_pick_vmem_limit(6 * block_bytes, cap),
        ),
        cost_estimate=pl.CostEstimate(
            flops=2 * B * N * N,
            transcendentals=0,
            bytes_accessed=2 * B * N * N * itemsize,
        ),
    )(Xb)


def _frame_panel(Xb: jax.Array, N: int, itemsize: int, cap: int):
    """Row/column panel path for large N.  Returns None if no panel fits."""
    B = Xb.shape[0]
    budget = cap - (8 << 20)
    tn = None
    for cand in (1024, 512, 256, 128):            # lane-aligned panel heights
        if cand <= N and 6 * cand * N * itemsize <= budget:
            tn = cand
            break
    if tn is None:
        return None
    nt = pl.cdiv(N, tn)                           # ragged last panel is masked
    panel_bytes = tn * N * itemsize

    return pl.pallas_call(
        _frame_panel_kernel,
        out_shape=jax.ShapeDtypeStruct((B, N, N), Xb.dtype),
        grid_spec=pltpu.PrefetchScalarGridSpec(
            num_scalar_prefetch=0,
            grid=(B, nt),
            in_specs=[
                pl.BlockSpec((1, tn, N), lambda b, i: (b, i, 0)),
                pl.BlockSpec((1, N, tn), lambda b, i: (b, 0, i)),
            ],
            out_specs=pl.BlockSpec((1, tn, N), lambda b, i: (b, i, 0)),
        ),
        compiler_params=pltpu.CompilerParams(
            dimension_semantics=("parallel", "parallel"),
            vmem_limit_bytes=_pick_vmem_limit(6 * panel_bytes, cap),
        ),
        cost_estimate=pl.CostEstimate(
            flops=2 * B * N * N,
            transcendentals=0,
            bytes_accessed=3 * B * N * N * itemsize,
        ),
    )(Xb, Xb)


def _frame_tile(Xb: jax.Array, N: int, itemsize: int, cap: int) -> jax.Array:
    """2-D tile fallback (any N; ragged tiles are masked)."""
    B = Xb.shape[0]
    budget = cap - (8 << 20)
    tn = 512
    while tn > 128 and (6 * tn * tn * itemsize > budget or tn > N):
        tn //= 2
    if tn > N:
        tn = N
    nt = pl.cdiv(N, tn)
    tile_bytes = tn * tn * itemsize

    return pl.pallas_call(
        _frame_tile_kernel,
        out_shape=jax.ShapeDtypeStruct((B, N, N), Xb.dtype),
        grid_spec=pltpu.PrefetchScalarGridSpec(
            num_scalar_prefetch=0,
            grid=(B, nt, nt),
            in_specs=[
                pl.BlockSpec((1, tn, tn), lambda b, i, j: (b, i, j)),
                pl.BlockSpec((1, tn, tn), lambda b, i, j: (b, j, i)),
            ],
            out_specs=pl.BlockSpec((1, tn, tn), lambda b, i, j: (b, i, j)),
        ),
        compiler_params=pltpu.CompilerParams(
            dimension_semantics=("parallel", "parallel", "parallel"),
            vmem_limit_bytes=_pick_vmem_limit(6 * tile_bytes, cap),
        ),
        cost_estimate=pl.CostEstimate(
            flops=2 * B * N * N,
            transcendentals=0,
            bytes_accessed=3 * B * N * N * itemsize,
        ),
    )(Xb, Xb)


def unitary_frame(X: jax.Array, *, force_path=None) -> jax.Array:
    """Pallas equivalent of unitary.forward for real-valued X of shape (..., 2n, 2n)."""
    if X.ndim < 2:
        raise ValueError("weights has dimension < 2")
    if X.shape[-2] != X.shape[-1]:
        raise ValueError("not squared matrix")
    if jnp.issubdtype(X.dtype, jnp.complexfloating):
        # TODO(synk): complex support needs an explicit conj on the transposed operand.
        raise NotImplementedError("complex dtypes are not supported by this Pallas kernel")

    orig_shape = X.shape
    N = int(X.shape[-1])
    B = 1
    for d in X.shape[:-2]:
        B *= int(d)
    Xb = X.reshape(B, N, N)
    itemsize = jnp.dtype(X.dtype).itemsize
    per_mat = N * N * itemsize
    cap = _vmem_cap_bytes()

    path = force_path
    if path is None:
        if B * per_mat <= _SMALL_BYPASS_BYTES:
            path = "jax"          # launch overhead > DMA time; XLA is at roofline
        elif per_mat > _target_block_bytes(cap):
            path = "panel"
        else:
            path = "full"

    if path == "jax":
        out = (Xb - jnp.swapaxes(Xb, -2, -1)) * 0.5
    elif path == "full":
        out = _frame_full(Xb, N, itemsize, cap)
    elif path == "panel":
        out = _frame_panel(Xb, N, itemsize, cap)
        if out is None:           # even a 128-row panel would not fit VMEM
            out = _frame_tile(Xb, N, itemsize, cap)
    elif path == "tile":
        out = _frame_tile(Xb, N, itemsize, cap)
    else:
        raise ValueError(f"unknown path: {path}")
    return out.reshape(orig_shape)


# ------------------------------------------------------------- reference ---

def _reference_frame(X: jnp.ndarray) -> jnp.ndarray:
    return (X - jnp.conjugate(jnp.swapaxes(X, -2, -1))) / 2


def _check(Y, X, atol=1e-6):
    assert Y.shape == X.shape and Y.dtype == X.dtype
    Yf = Y.astype(jnp.float32)
    ref = _reference_frame(X.astype(jnp.float32))
    assert jnp.allclose(Yf, ref, atol=atol), "mismatch vs reference"
    assert jnp.allclose(jnp.swapaxes(Yf, -2, -1), -Yf, atol=10 * atol), "not skew-symmetric"


# ------------------------------------------------------------------- demo ---

if __name__ == "__main__":
    key = jax.random.PRNGKey(0)

    # batch=2, size 2n=32 -> auto-dispatch takes the fused pure-JAX tiny path
    X = jax.random.normal(key, (2, 32, 32), dtype=jnp.float32)
    Y = jax.block_until_ready(unitary_frame(X))
    _check(Y, X)

    # same tiny input forced through the Pallas full-matrix path
    Yp = jax.block_until_ready(unitary_frame(X, force_path="full"))
    _check(Yp, X)

    # bf16 stays in bf16 end-to-end (halves HBM traffic)
    Xb16 = X.astype(jnp.bfloat16)
    Yb16 = jax.block_until_ready(unitary_frame(Xb16, force_path="full"))
    _check(Yb16, Xb16, atol=2e-2)

    # ragged batch: B=5 split over 2 grid steps, last block partial (no pad/slice)
    X5 = jax.random.normal(jax.random.PRNGKey(1), (5, 256, 256), dtype=jnp.float32)
    Y5 = jax.block_until_ready(unitary_frame(X5, force_path="full"))
    _check(Y5, X5)

    # large-N row/column panel path, ragged last panel (384 = 256 + 128)
    X2 = jax.random.normal(jax.random.PRNGKey(2), (2, 384, 384), dtype=jnp.float32)
    Y2 = jax.block_until_ready(unitary_frame(X2, force_path="panel"))
    _check(Y2, X2)

    # 2-D tile fallback path, ragged tiles (640 = 512 + 128)
    X3 = jax.random.normal(jax.random.PRNGKey(3), (1, 640, 640), dtype=jnp.float32)
    Y3 = jax.block_until_ready(unitary_frame(X3, force_path="tile"))
    _check(Y3, X3)

    print("KERNEL_OK")
</pallas_src>

<mosaic_0001>
module attributes {stable_mosaic.version = 11 : i64} {
  func.func @_frame_full_kernel(%arg0: i32, %arg1: memref<1x32x32xf32, #tpu.memory_space<vmem>>, %arg2: memref<1x32x32xf32, #tpu.memory_space<vmem>>) attributes {dimension_semantics = [#tpu.dimension_semantics<parallel>], iteration_bounds = array<i64: 2>, scalar_prefetch = 0 : i64, scratch_operands = 0 : i64, tpu.core_type = #tpu.core_type<tc>, window_params = [{transform_indices = @transform_0, window_bounds = array<i64: 1, 32, 32>}, {transform_indices = @transform_1, window_bounds = array<i64: 1, 32, 32>}]} {
    %c0 = arith.constant 0 : index
    %c0_0 = arith.constant 0 : index
    %c0_1 = arith.constant 0 : index
    %0 = vector.load %arg1[%c0, %c0_0, %c0_1] : memref<1x32x32xf32, #tpu.memory_space<vmem>>, vector<1x32x32xf32>
    %1 = tpu.transpose %0, [0, 2, 1] : vector<1x32x32xf32> -> vector<1x32x32xf32>
    %2 = arith.subf %0, %1 : vector<1x32x32xf32>
    %cst = arith.constant 5.000000e-01 : f32
    %3 = vector.broadcast %cst : f32 to vector<1x32x32xf32>
    %4 = arith.mulf %2, %3 : vector<1x32x32xf32>
    %c0_2 = arith.constant 0 : index
    %c0_3 = arith.constant 0 : index
    %c0_4 = arith.constant 0 : index
    %5 = vector.load %arg2[%c0_2, %c0_3, %c0_4] : memref<1x32x32xf32, #tpu.memory_space<vmem>>, vector<1x32x32xf32>
    tpu.vector_store %arg2[%c0_2, %c0_3, %c0_4], %4 {strides = array<i32>} : memref<1x32x32xf32, #tpu.memory_space<vmem>>, vector<1x32x32xf32>,
    return
  }
  func.func @transform_0(%arg0: i32) -> (i32, i32, i32) {
    %c0_i32 = arith.constant 0 : i32
    %c0_i32_0 = arith.constant 0 : i32
    %c0_i32_1 = arith.constant 0 : i32
    return %arg0, %c0_i32, %c0_i32_0 : i32, i32, i32
  }
  func.func @transform_1(%arg0: i32) -> (i32, i32, i32) {
    %c0_i32 = arith.constant 0 : i32
    %c0_i32_0 = arith.constant 0 : i32
    %c0_i32_1 = arith.constant 0 : i32
    return %arg0, %c0_i32, %c0_i32_0 : i32, i32, i32
  }
}

</mosaic_0001>

<llo_original>
// kernel: tpu_custom_call.1
$region0: #{tpu_custom_call.1}
  #allocation0 [shape = 'u32[]', space=smem, size = 0x4, offset = 0x4, fixed_abs, tag = 'smem constant byte address 0x4 - core index']
  #allocation1 [shape = 'u32[144,128]{1,0:T(1,128)}', space=vmem, size = 0x12000, scoped, tag = 'internal scratch']
  %s0 = inlined_call_operand.hbm [shape: f32[2,32,32], index: 0, kind: input, shape index: {}]
  %s1 = inlined_call_operand.hbm [shape: f32[2,32,32], index: 1, kind: output, shape index: {}]
  %s2 = sld [smem:[#allocation0]]
  $region41: #{tpu_custom_call.1} parent=0
    _
  %s4 = ssub.s32 1, %s2
  %s5 = scalar_select 0, %s4, %s2
  $region1: #{tpu_custom_call.1} parent=0
    #allocation2 [shape = 'u8[32768]{0}', space=vmem, size = 0x8000, scoped, tag = 'input window, operand 0']
    #allocation3 [shape = 's32[2]{0}', space=sflag, size = 0x8, scoped, tag = 'scoped memory for tpu_custom_call.1']
    #allocation4 [shape = 's32[2]{0}', space=sflag, size = 0x8, scoped, tag = 'scoped memory for tpu_custom_call.1']
    #allocation5 [shape = 'u8[32768]{0}', space=vmem, size = 0x8000, scoped, tag = 'output window, operand 0']
    %6 = vsyncpa [#allocation3], 0
    %s7 = scalar_lea.sflag [#allocation3], 1
    %8 = vsyncpa %s7, 0
    %9 = vsyncpa [#allocation4], 0
    %s10 = scalar_lea.sflag [#allocation4], 1
    %11 = vsyncpa %s10, 0
    loop: start=0, step=1, limit=4
    $region2: #{tpu_custom_call.1} parent=1 // loop_pre_header
      _
    $region3: #{tpu_custom_call.1} parent=1 // loop_header
      %s13 = sphi 0, %s17
      %p14 = scmp.ge.s32.totalorder %s13, 4
      %s23 = sphi 0, %s25
      %s26 = sphi 0, %s23
      %s27 = sphi 0, %s26
      %s43 = sphi 0, %s27
      %s49 = sphi 0, %s51
      %s52 = sphi 0, %s49
      %s53 = sphi 0, %s52
      %s69 = sphi 0, %s53
    $region4: #{tpu_custom_call.1} parent=1 // loop_header_branch
      %16 = sbr.rel (%p14) target = $region8
    $region5: #{tpu_custom_call.1} parent=1 // loop_body
      %s18 = ssub.s32 %s13, 1
      %s19 = ssub.s32 %s13, 2
      %s20 = sadd.s32 %s13, 1
      %s21 = ssub.s32 %s13, %s20
      %p22 = scmp.eq.s32.totalorder %s21, 0
      %s24 = sadd.s32 %s23, 1
      %s25 = scalar_select %p22, %s23, %s24
      %p28 = pneg %p22
      %p29 = scmp.eq.s32.totalorder %s13, 1
      %p30 = por %p28, %p29
      %p31 = scmp.ne.s32.totalorder %s23, %s26
      %p32 = scmp.eq.s32.totalorder %s13, 0
      %p33 = por %p31, %p32
      %p34 = scmp.ne.s32.totalorder %s23, %s26
      %p35 = scmp.eq.s32.totalorder %s18, 1
      %p36 = por %p34, %p35
      %p37 = scmp.ne.s32.totalorder %s26, %s27
      %p38 = scmp.eq.s32.totalorder %s18, 0
      %p39 = por %p37, %p38
      %p40 = scmp.ne.s32.totalorder %s26, %s27
      %p41 = scmp.eq.s32.totalorder %s19, 1
      %p42 = por %p40, %p41
      %p44 = scmp.ne.s32.totalorder %s27, %s43
      %p45 = scmp.eq.s32.totalorder %s19, 0
      %p46 = por %p44, %p45
      %s47 = ssub.s32 %s13, %s20
      %p48 = scmp.eq.s32.totalorder %s47, 0
      %s50 = sadd.s32 %s49, 1
      %s51 = scalar_select %p48, %s49, %s50
      %p54 = pneg %p48
      %p55 = scmp.eq.s32.totalorder %s13, 1
      %p56 = por %p54, %p55
      %p57 = scmp.ne.s32.totalorder %s49, %s52
      %p58 = scmp.eq.s32.totalorder %s13, 0
      %p59 = por %p57, %p58
      %p60 = scmp.ne.s32.totalorder %s49, %s52
      %p61 = scmp.eq.s32.totalorder %s18, 1
      %p62 = por %p60, %p61
      %p63 = scmp.ne.s32.totalorder %s52, %s53
      %p64 = scmp.eq.s32.totalorder %s18, 0
      %p65 = por %p63, %p64
      %p66 = scmp.ne.s32.totalorder %s52, %s53
      %p67 = scmp.eq.s32.totalorder %s19, 1
      %p68 = por %p66, %p67
      %p70 = scmp.ne.s32.totalorder %s53, %s69
      %p71 = scmp.eq.s32.totalorder %s19, 0
      %p72 = por %p70, %p71
      %p73 = scmp.le.s32.totalorder 1, %s13
      %p74 = scmp.lt.s32.totalorder %s13, 3
      %p75 = pnand %p73, %p74
      %p76 = pneg %p75
      // Predicated region
      $region9: #{tpu_custom_call.1} parent=5 // pred_check
        _
      $region10: #{tpu_custom_call.1} parent=5 // pred_check_branch
        %78 = sbr.rel (%p75) target = $region12
      $region11: #{tpu_custom_call.1} parent=5 // pred_region
        %s79 = ssub.s32 %s13, 1
      $region12: #{tpu_custom_call.1} parent=5 // pred_fallthru
        _
      %p80 = scmp.lt.s32.totalorder %s13, 2
      // Predicated region
      $region13: #{tpu_custom_call.1} parent=5 // pred_check
        %p81 = pneg %p80
      $region14: #{tpu_custom_call.1} parent=5 // pred_check_branch
        %83 = sbr.rel (%p81) target = $region16
      $region15: #{tpu_custom_call.1} parent=5 // pred_region
        // Predicated region
        $region17: #{tpu_custom_call.1} parent=15 // pred_check
          %p84 = pneg %p33
        $region18: #{tpu_custom_call.1} parent=15 // pred_check_branch
          %86 = sbr.rel (%p84) target = $region20
        $region19: #{tpu_custom_call.1} parent=15 // pred_region
          %s87 = sand.u32 %s23, 1
          %s88 = scalar_lea.sflag [#allocation3], %s87
          %s89 = sand.u32 %s23, 1
          %s90 = smul.addr %s89, 32
          %s91 = scalar_lea.vmem [#allocation2], %s90
          %s93 = ssub.s32 512, 512
          %94 = vsyncadd %s88, %s93
          %s95 = smul.addr %s13, 4
          %s96 = smul.addr %s95, 128
          %s97 = scalar_lea.hbm %s0, %s96
          %s98 = sshll.u32 %s91, 4
          %s99 = int_to_ptr.vmem [resolvable:$true] %s98
          %104 = dma.hbm_to_vmem [thread:$0]  %s97, 512, %s99, %s88, 128, 128, 8
        $region20: #{tpu_custom_call.1} parent=15 // pred_fallthru
          _
      $region16: #{tpu_custom_call.1} parent=5 // pred_fallthru
        _
      %p105 = scmp.le.s32.totalorder 1, %s13
      %p106 = scmp.lt.s32.totalorder %s13, 3
      %p107 = pnand %p105, %p106
      %p108 = pneg %p107
      // Predicated region
      $region21: #{tpu_custom_call.1} parent=5 // pred_check
        _
      $region22: #{tpu_custom_call.1} parent=5 // pred_check_branch
        %110 = sbr.rel (%p107) target = $region24
      $region23: #{tpu_custom_call.1} parent=5 // pred_region
        %s111 = ssub.s32 %s13, 1
        %s112 = sand.u32 %s26, 1
        %s113 = scalar_lea.sflag [#allocation3], %s112
        %s114 = sand.u32 %s26, 1
        %s115 = smul.addr %s114, 32
        %s116 = scalar_lea.vmem [#allocation2], %s115
        // Predicated region
        $region25: #{tpu_custom_call.1} parent=23 // pred_check
          %p117 = pneg %p39
        $region26: #{tpu_custom_call.1} parent=23 // pred_check_branch
          %119 = sbr.rel (%p117) target = $region28
        $region27: #{tpu_custom_call.1} parent=23 // pred_region
          %120 = dma.done %s113, 512
        $region28: #{tpu_custom_call.1} parent=23 // pred_fallthru
          _
        %s121 = sand.u32 %s26, 1
        %s122 = scalar_lea.sflag [#allocation3], %s121
        %s123 = sand.u32 %s26, 1
        %s124 = smul.addr %s123, 32
        %s125 = scalar_lea.vmem [#allocation2], %s124
        %p126 = pneg %p39
        %p127 = pneg %p36
        %p128 = pneg %p65
        %p129 = pneg %p62
        %s130 = sand.u32 %s52, 1
        %s131 = scalar_lea.sflag [#allocation4], %s130
        %s132 = sand.u32 %s52, 1
        %s133 = smul.addr %s132, 32
        %s134 = scalar_lea.vmem [#allocation5], %s133
        %v135 = vld [vmem:[%s116] sm:$0xff]
        %v136 = vld [vmem:[%s116 + $0x8] sm:$0xff]
        %v137 = vld [vmem:[%s116 + $0x10] sm:$0xff]
        %v138 = vld [vmem:[%s116 + $0x18] sm:$0xff]
        %139 = vxpose.xlu0.b32.start [1/16] %v135, 128
        %140 = vxpose.xlu0.b32.cont [2/16] %v136, 128
        %141 = vxpose.xlu0.b32.cont [3/16] %v137, 128
        %142 = vxpose.xlu0.b32.cont [4/16] %v138, 128
        %143 = vxpose.xlu0.b32.cont [5/16] 0.0, 128
        %144 = vxpose.xlu0.b32.cont [6/16] 0.0, 128
        %145 = vxpose.xlu0.b32.cont [7/16] 0.0, 128
        %146 = vxpose.xlu0.b32.cont [8/16] 0.0, 128
        %147 = vxpose.xlu0.b32.cont [9/16] 0.0, 128
        %148 = vxpose.xlu0.b32.cont [10/16] 0.0, 128
        %149 = vxpose.xlu0.b32.cont [11/16] 0.0, 128
        %150 = vxpose.xlu0.b32.cont [12/16] 0.0, 128
        %151 = vxpose.xlu0.b32.cont [13/16] 0.0, 128
        %152 = vxpose.xlu0.b32.cont [14/16] 0.0, 128
        %153 = vxpose.xlu0.b32.cont [15/16] 0.0, 128
        %154 = vxpose.xlu0.b32.end [16/16] 0.0, 128
        %v155 = vpop.trf.xlu0
        %v156 = vpop.trf.xlu0
        %v157 = vpop.trf.xlu0
        %v158 = vpop.trf.xlu0
        %v159 = vpop.trf.xlu0
        %v160 = vpop.trf.xlu0
        %v161 = vpop.trf.xlu0
        %v162 = vpop.trf.xlu0
        %v163 = vpop.trf.xlu0
        %v164 = vpop.trf.xlu0
        %v165 = vpop.trf.xlu0
        %v166 = vpop.trf.xlu0
        %v167 = vpop.trf.xlu0
        %v168 = vpop.trf.xlu0
        %v169 = vpop.trf.xlu0
        %v170 = vpop.trf.xlu0
        %v171 = vsub.f32 %v135, %v155
        %v172 = vsub.f32 %v136, %v156
        %v173 = vsub.f32 %v137, %v157
        %v174 = vsub.f32 %v138, %v158
        %v175 = vmul.f32 %v171, 0.5
        %v176 = vmul.f32 %v172, 0.5
        %v177 = vmul.f32 %v173, 0.5
        %v178 = vmul.f32 %v174, 0.5
        %vm179 = vcmask 261120
        %180 = vst.msk [vmem:[%s134] sm:$0xff] %vm179, %v175
        %181 = vst.msk [vmem:[%s134 + $0x8] sm:$0xff] %vm179, %v176
        %182 = vst.msk [vmem:[%s134 + $0x10] sm:$0xff] %vm179, %v177
        %183 = vst.msk [vmem:[%s134 + $0x18] sm:$0xff] %vm179, %v178
        %s184 = sand.u32 %s52, 1
        %s185 = scalar_lea.sflag [#allocation4], %s184
        %s186 = sand.u32 %s52, 1
        %s187 = smul.addr %s186, 32
        %s188 = scalar_lea.vmem [#allocation5], %s187
        // Predicated region
        $region29: #{tpu_custom_call.1} parent=23 // pred_check
          %p189 = pneg %p62
        $region30: #{tpu_custom_call.1} parent=23 // pred_check_branch
          %191 = sbr.rel (%p189) target = $region32
        $region31: #{tpu_custom_call.1} parent=23 // pred_region
          %s193 = ssub.s32 512, 512
          %194 = vsyncadd %s185, %s193
          %s195 = smul.addr %s18, 4
          %s196 = smul.addr %s195, 128
          %s197 = scalar_lea.hbm %s1, %s196
          %s198 = sshll.u32 %s188, 4
          %s199 = int_to_ptr.vmem [resolvable:$true] %s198
          %204 = dma.vmem_to_hbm [thread:$0]  %s199, 512, %s197, %s185, 128, 128, 8
        $region32: #{tpu_custom_call.1} parent=23 // pred_fallthru
          _
      $region24: #{tpu_custom_call.1} parent=5 // pred_fallthru
        _
      %p205 = scmp.le.s32.totalorder 2, %s13
      // Predicated region
      $region33: #{tpu_custom_call.1} parent=5 // pred_check
        %p206 = pneg %p205
      $region34: #{tpu_custom_call.1} parent=5 // pred_check_branch
        %208 = sbr.rel (%p206) target = $region36
      $region35: #{tpu_custom_call.1} parent=5 // pred_region
        %s209 = ssub.s32 %s13, 2
        // Predicated region
        $region37: #{tpu_custom_call.1} parent=35 // pred_check
          %p210 = pneg %p68
        $region38: #{tpu_custom_call.1} parent=35 // pred_check_branch
          %212 = sbr.rel (%p210) target = $region40
        $region39: #{tpu_custom_call.1} parent=35 // pred_region
          %s213 = sand.u32 %s53, 1
          %s214 = scalar_lea.sflag [#allocation4], %s213
          %s215 = sand.u32 %s53, 1
          %s216 = smul.addr %s215, 32
          %s217 = scalar_lea.vmem [#allocation5], %s216
          %218 = dma.done %s214, 512
        $region40: #{tpu_custom_call.1} parent=35 // pred_fallthru
          _
      $region36: #{tpu_custom_call.1} parent=5 // pred_fallthru
        _
    $region6: #{tpu_custom_call.1} parent=1 // loop_footer
      %s17 = sadd.s32 1, %s13
    $region7: #{tpu_custom_call.1} parent=1 // loop_footer_branch
      %12 = sbr.rel target = $region3
    $region8: #{tpu_custom_call.1} parent=1 // loop_exit
      _
    %219 = vsyncpa [#allocation3], 1
    %s220 = scalar_lea.sflag [#allocation3], 1
    %221 = vsyncpa %s220, 1
    %222 = vsyncpa [#allocation4], 1
    %s223 = scalar_lea.sflag [#allocation4], 1
    %224 = vsyncpa %s223, 1

</llo_original>
